<compile_context>
chip_gen: v6e
topology: v6e:2x2x1
jax: 0.10.0
libtpu: 0.0.40
codegen_flags: <defaults>
</compile_context>

<pallas_src>
import functools

import jax
import jax.numpy as jnp
from jax import lax
from jax.experimental import pallas as pl
from jax.experimental.pallas import tpu as pltpu


def _round_up(x, m):
    return ((x + m - 1) // m) * m


def _logaddexp(a, b):
    # Inputs are always finite here (every row/column block has >= 1 valid
    # row, so no partial LSE that we accumulate is -inf).
    mx = jnp.maximum(a, b)
    return mx + jnp.log(jnp.exp(a - mx) + jnp.exp(b - mx))


def _clip_loss_kernel(inv_temp_ref, txt_ref, img_ref,
                      loss_ref, lse_col_ref, lse_row_ref,
                      *, block, n_valid, rows_per_split, has_pad):
    # inv_temp_ref : SMEM (1,) f32            -- 1 / clamp(temperature, 0.01)
    # txt_ref      : VMEM (b, D)              -- text rows of global row block
    # img_ref      : VMEM (b, D)              -- image rows of column block cj
    # loss_ref     : VMEM (1,1,1) f32         -- per-core-split loss partial
    # lse_col_ref  : VMEM (1,num_blocks,1,b)  -- per-core-split column LSEs
    # lse_row_ref  : VMEM (b,1) f32           -- running row LSE (scratch)
    c = pl.program_id(0)            # core-split index ("parallel" axis)
    ri = pl.program_id(1)           # row block within this split
    cj = pl.program_id(2)           # column block (inner reduction axis)
    n_col_blocks = pl.num_programs(2)
    g_ri = c * rows_per_split + ri  # global row block index

    # ---- init the resident per-split loss accumulator ----
    @pl.when(jnp.logical_and(ri == 0, cj == 0))
    def _():
        loss_ref[...] = jnp.zeros_like(loss_ref)

    # Logits tile: contract D of both operands directly (no transpose), MXU
    # fed the input dtype, f32 accumulation.  ONE matmul per tile.
    dims = (((1,), (1,)), ((), ()))
    s = lax.dot_general(txt_ref[...], img_ref[...], dimension_numbers=dims,
                        preferred_element_type=jnp.float32)        # (b, b)
    # 1/T on the f32 logits (b^2 VPU muls); no per-step feature re-scaling.
    s = s * inv_temp_ref[0]

    s_row = s   # t->i (row) direction: mask padded image columns
    s_col = s   # i->t (col) direction: mask padded text rows
    if has_pad:
        # TODO(synk): these masks only matter on the last row / column block;
        # kept unconditional (all-true on interior tiles) because a
        # vector-valued branch is not worth the lowering risk.
        col_ids = cj * block + lax.broadcasted_iota(jnp.int32, (1, block), 1)
        s_row = jnp.where(col_ids < n_valid, s, -jnp.inf)
        row_ids = g_ri * block + lax.broadcasted_iota(jnp.int32, (block, 1), 0)
        s_col = jnp.where(row_ids < n_valid, s, -jnp.inf)

    # Per-tile log-sum-exp for both directions from the SAME logits tile.
    r_max = jnp.max(s_row, axis=-1, keepdims=True)                      # (b,1)
    tile_lse_row = r_max + jnp.log(
        jnp.sum(jnp.exp(s_row - r_max), axis=-1, keepdims=True))
    c_max = jnp.max(s_col, axis=0, keepdims=True)                       # (1,b)
    tile_lse_col = c_max + jnp.log(
        jnp.sum(jnp.exp(s_col - c_max), axis=0, keepdims=True))

    # ---- online row LSE (reduction over the inner grid axis cj) ----
    @pl.when(cj == 0)
    def _():
        lse_row_ref[...] = tile_lse_row

    @pl.when(cj > 0)
    def _():
        lse_row_ref[...] = _logaddexp(lse_row_ref[...], tile_lse_row)

    # ---- online column LSE over this split's row blocks ----
    # lane-major (1, b) slices of a resident output block -> dense stores.
    @pl.when(ri == 0)
    def _():
        lse_col_ref[0, cj] = tile_lse_col

    @pl.when(ri > 0)
    def _():
        lse_col_ref[0, cj] = _logaddexp(lse_col_ref[0, cj], tile_lse_col)

    # ---- diagonal ("correct class") logits: only on diagonal tiles ----
    @pl.when(g_ri == cj)
    def _():
        li = lax.broadcasted_iota(jnp.int32, (block, 1), 0)
        lj = lax.broadcasted_iota(jnp.int32, (1, block), 1)
        dmask = li == lj
        if has_pad:
            dmask = jnp.logical_and(dmask, (g_ri * block + li) < n_valid)
        diag_sum = jnp.sum(jnp.where(dmask, s, 0.0), keepdims=True)     # (1,1)
        loss_ref[0] += -2.0 * diag_sum

    # ---- row block finished: add its (masked) sum of row LSEs ----
    @pl.when(cj == n_col_blocks - 1)
    def _():
        vals = lse_row_ref[...]
        if has_pad:
            rids = g_ri * block + lax.broadcasted_iota(jnp.int32, (block, 1), 0)
            vals = jnp.where(rids < n_valid, vals, 0.0)
        loss_ref[0] += jnp.sum(vals, keepdims=True)


def _vmem_budget_bytes():
    """VMEM request ceiling with headroom for compiler-internal scratch."""
    try:
        cap = int(pltpu.get_tpu_info().vmem_capacity_bytes)
    except Exception:
        cap = 64 << 20          # conservative (v7x per-TensorCore VMEM)
    return int(max(min(cap - (16 << 20), 100 << 20), 24 << 20))


def clip_loss(image_features, text_features, temperature=0.01, block_size=512):
    """JAX/Pallas equivalent of CLIP_Loss(world_size=1).forward."""
    n, d = image_features.shape
    assert text_features.shape == (n, d)
    itemsize = jnp.dtype(image_features.dtype).itemsize

    # torch.clamp(self.temperature, min=0.01), folded as 1/T for the kernel.
    inv_temp = 1.0 / jnp.maximum(jnp.asarray([temperature], jnp.float32), 0.01)

    # Pad D to a lane multiple (zeros don't change the dot products).
    d_pad = _round_up(d, 128)
    if d_pad != d:
        dpad = ((0, 0), (0, d_pad - d))
        image_features = jnp.pad(image_features, dpad)
        text_features = jnp.pad(text_features, dpad)

    budget = _vmem_budget_bytes()

    # Tile size: multiple of 128 (MXU / lane aligned) when n >= 128, else 8.
    if n >= 128:
        b = _round_up(min(block_size, n), 128)
    else:
        b = _round_up(n, 8)

    def vmem_est(bb):
        npd = _round_up(n, bb)
        nb = npd // bb
        return (2 * 2 * bb * d_pad * itemsize   # double-buffered txt+img tiles
                + nb * 8 * bb * 4               # resident col-LSE output block
                + bb * 128 * 4                  # row-LSE scratch (lane padded)
                + 8 * bb * bb * 4               # logits tile + elementwise temps
                + (2 << 20))                    # headroom

    while b > 128 and vmem_est(b) > budget:
        b -= 128

    n_pad = _round_up(n, b)
    num_blocks = n_pad // b
    has_pad = n_pad != n
    if has_pad:
        pad = ((0, n_pad - n), (0, 0))
        image_features = jnp.pad(image_features, pad)
        text_features = jnp.pad(text_features, pad)

    # Split the row-block loop across TensorCores (v7x megacore).  On 1-TC
    # chips the leading axis just iterates serially (measured ~no cost).
    n_split = 2 if num_blocks % 2 == 0 else 1
    rows_per_split = num_blocks // n_split

    vmem_limit = int(min(max(vmem_est(b), 32 << 20), budget))

    kernel = functools.partial(_clip_loss_kernel, block=b, n_valid=n,
                               rows_per_split=rows_per_split, has_pad=has_pad)

    loss_parts, lse_col_parts = pl.pallas_call(
        kernel,
        out_shape=(
            jax.ShapeDtypeStruct((n_split, 1, 1), jnp.float32),
            jax.ShapeDtypeStruct((n_split, num_blocks, 1, b), jnp.float32),
        ),
        grid_spec=pltpu.PrefetchScalarGridSpec(
            num_scalar_prefetch=0,
            grid=(n_split, rows_per_split, num_blocks),
            in_specs=[
                pl.BlockSpec(memory_space=pltpu.MemorySpace.SMEM),       # 1/T
                pl.BlockSpec((b, d_pad),                                 # text
                             lambda c, ri, cj: (c * rows_per_split + ri, 0)),
                pl.BlockSpec((b, d_pad), lambda c, ri, cj: (cj, 0)),     # image
            ],
            out_specs=[
                pl.BlockSpec((1, 1, 1), lambda c, ri, cj: (c, 0, 0)),
                pl.BlockSpec((1, num_blocks, 1, b),
                             lambda c, ri, cj: (c, 0, 0, 0)),
            ],
            scratch_shapes=[pltpu.VMEM((b, 1), jnp.float32)],  # running row LSE
        ),
        compiler_params=pltpu.CompilerParams(
            dimension_semantics=("parallel", "arbitrary", "arbitrary"),
            vmem_limit_bytes=vmem_limit,
        ),
    )(inv_temp, text_features, image_features)

    # Epilogue: combine per-split column LSEs, mask padding, normalize.
    lse_col = lse_col_parts.reshape(n_split, n_pad)
    combined = lse_col[0]
    for k in range(1, n_split):
        combined = jnp.logaddexp(combined, lse_col[k])
    if has_pad:
        combined = jnp.where(jnp.arange(n_pad) < n, combined, 0.0)
    total = jnp.sum(loss_parts) + jnp.sum(combined)
    # loss = (CE_t2i + CE_i2t) / 2 = (sum row LSE + sum col LSE - 2 sum diag)/(2N)
    return total / (2.0 * n)


def _reference_clip_loss(image_features, text_features, temperature=0.01):
    temp = jnp.maximum(jnp.float32(temperature), 0.01)
    sim = jnp.einsum('id,jd->ij', text_features.astype(jnp.float32),
                     image_features.astype(jnp.float32))
    logits = sim / temp
    labels = jnp.arange(sim.shape[0])

    def ce(lg):
        logp = jax.nn.log_softmax(lg, axis=-1)
        return -jnp.mean(logp[jnp.arange(lg.shape[0]), labels])

    return (ce(logits) + ce(logits.T)) / 2.0


if __name__ == "__main__":
    key = jax.random.PRNGKey(0)
    ks = jax.random.split(key, 8)

    def check(img, txt, temp, block_size, tag):
        loss = jax.block_until_ready(
            clip_loss(img, txt, temperature=temp, block_size=block_size))
        ref = _reference_clip_loss(img, txt, temperature=temp)
        assert jnp.allclose(loss, ref, rtol=2e-3, atol=2e-3), (tag, loss, ref)

    # 1) tiny single-tile path (batch 8, dim 32)
    img = jax.random.normal(ks[0], (8, 32), dtype=jnp.float32)
    txt = jax.random.normal(ks[1], (8, 32), dtype=jnp.float32)
    check(img, txt, 0.01, 512, "single-tile")

    # 2) single tile with row/col padding (N=20 -> b=24)
    img = jax.random.normal(ks[2], (20, 32), dtype=jnp.float32)
    txt = jax.random.normal(ks[3], (20, 32), dtype=jnp.float32)
    check(img, txt, 0.05, 8, "padded-single-tile")

    # 3) multi-block with padding + 2-way core split (N=200 -> b=128, 2 blocks)
    img = jax.random.normal(ks[4], (200, 40), dtype=jnp.float32)
    txt = jax.random.normal(ks[5], (200, 40), dtype=jnp.float32)
    check(img, txt, 0.05, 128, "padded-multi-block")

    # 4) multi-block, no padding, 2 row blocks per split (N=512, b=128)
    img = jax.random.normal(ks[6], (512, 64), dtype=jnp.float32)
    txt = jax.random.normal(ks[7], (512, 64), dtype=jnp.float32)
    check(img, txt, 0.05, 128, "multi-block")

    print("KERNEL_OK")
</pallas_src>

<mosaic_0001>
module attributes {stable_mosaic.version = 11 : i64} {
  func.func @_clip_loss_kernel(%arg0: i32, %arg1: i32, %arg2: i32, %arg3: memref<1xf32, #tpu.memory_space<smem>>, %arg4: memref<8x128xf32, #tpu.memory_space<vmem>>, %arg5: memref<8x128xf32, #tpu.memory_space<vmem>>, %arg6: memref<1x1x1xf32, #tpu.memory_space<vmem>>, %arg7: memref<1x1x1x8xf32, #tpu.memory_space<vmem>>, %arg8: memref<8x1xf32, #tpu.memory_space<vmem>>) attributes {dimension_semantics = [#tpu.dimension_semantics<parallel>, #tpu.dimension_semantics<arbitrary>, #tpu.dimension_semantics<arbitrary>], iteration_bounds = array<i64: 1, 1, 1>, scalar_prefetch = 0 : i64, scratch_operands = 1 : i64, tpu.core_type = #tpu.core_type<tc>, window_params = [{transform_indices = @transform_0, window_bounds = array<i64: 1>}, {transform_indices = @transform_1, window_bounds = array<i64: 8, 128>}, {transform_indices = @transform_2, window_bounds = array<i64: 8, 128>}, {transform_indices = @transform_3, window_bounds = array<i64: 1, 1, 1>}, {transform_indices = @transform_4, window_bounds = array<i64: 1, 1, 1, 8>}]} {
    %c1_i32 = arith.constant 1 : i32
    %0 = arith.muli %arg0, %c1_i32 : i32
    %1 = arith.addi %0, %arg1 : i32
    %c0_i32 = arith.constant 0 : i32
    %2 = arith.cmpi eq, %arg1, %c0_i32 : i32
    %c0_i32_0 = arith.constant 0 : i32
    %3 = arith.cmpi eq, %arg2, %c0_i32_0 : i32
    %4 = arith.andi %2, %3 : i1
    %5 = arith.extui %4 : i1 to i32
    %c0_i32_1 = arith.constant 0 : i32
    %6 = arith.cmpi ne, %5, %c0_i32_1 : i32
    scf.if %6 {
      %cst_21 = arith.constant 0.000000e+00 : f32
      %49 = vector.broadcast %cst_21 : f32 to vector<1x1x1xf32>
      %c0_22 = arith.constant 0 : index
      %c0_23 = arith.constant 0 : index
      %c0_24 = arith.constant 0 : index
      %50 = vector.load %arg6[%c0_22, %c0_23, %c0_24] : memref<1x1x1xf32, #tpu.memory_space<vmem>>, vector<1x1x1xf32>
      tpu.vector_store %arg6[%c0_22, %c0_23, %c0_24], %49 {strides = array<i32>} : memref<1x1x1xf32, #tpu.memory_space<vmem>>, vector<1x1x1xf32>,
    } else {
    }
    %c0 = arith.constant 0 : index
    %c0_2 = arith.constant 0 : index
    %7 = vector.load %arg4[%c0, %c0_2] : memref<8x128xf32, #tpu.memory_space<vmem>>, vector<8x128xf32>
    %c0_3 = arith.constant 0 : index
    %c0_4 = arith.constant 0 : index
    %8 = vector.load %arg5[%c0_3, %c0_4] : memref<8x128xf32, #tpu.memory_space<vmem>>, vector<8x128xf32>
    %cst = arith.constant dense<0.000000e+00> : vector<8x8xf32>
    %9 = tpu.matmul %7, %8, %cst {dimension_numbers = #tpu.dot_dimension_numbers<[1], [1], [0], [0], [0, 0, 1, 0], [], []>} : vector<8x128xf32>, vector<8x128xf32>, vector<8x8xf32> -> vector<8x8xf32>
    %c0_5 = arith.constant 0 : index
    %10 = memref.load %arg3[%c0_5] : memref<1xf32, #tpu.memory_space<smem>>
    %11 = vector.broadcast %10 : f32 to vector<8x8xf32>
    %12 = arith.mulf %9, %11 : vector<8x8xf32>
    %cst_6 = arith.constant dense<0xFF800000> : vector<8xf32>
    %13 = vector.multi_reduction <maximumf>, %12, %cst_6 [1] : vector<8x8xf32> to vector<8xf32>
    %14 = vector.shape_cast %13 : vector<8xf32> to vector<8x1xf32>
    %15 = vector.broadcast %14 : vector<8x1xf32> to vector<8x8xf32>
    %16 = arith.subf %12, %15 : vector<8x8xf32>
    %17 = math.exp %16 : vector<8x8xf32>
    %cst_7 = arith.constant dense<0.000000e+00> : vector<8xf32>
    %18 = vector.multi_reduction <add>, %17, %cst_7 [1] : vector<8x8xf32> to vector<8xf32>
    %19 = vector.shape_cast %18 : vector<8xf32> to vector<8x1xf32>
    %20 = math.log %19 : vector<8x1xf32>
    %21 = arith.addf %14, %20 : vector<8x1xf32>
    %cst_8 = arith.constant dense<0xFF800000> : vector<8xf32>
    %22 = vector.multi_reduction <maximumf>, %12, %cst_8 [0] : vector<8x8xf32> to vector<8xf32>
    %23 = vector.shape_cast %22 : vector<8xf32> to vector<1x8xf32>
    %24 = vector.broadcast %23 : vector<1x8xf32> to vector<8x8xf32>
    %25 = arith.subf %12, %24 : vector<8x8xf32>
    %26 = math.exp %25 : vector<8x8xf32>
    %cst_9 = arith.constant dense<0.000000e+00> : vector<8xf32>
    %27 = vector.multi_reduction <add>, %26, %cst_9 [0] : vector<8x8xf32> to vector<8xf32>
    %28 = vector.shape_cast %27 : vector<8xf32> to vector<1x8xf32>
    %29 = math.log %28 : vector<1x8xf32>
    %30 = arith.addf %23, %29 : vector<1x8xf32>
    %c0_i32_10 = arith.constant 0 : i32
    %31 = arith.cmpi eq, %arg2, %c0_i32_10 : i32
    %32 = arith.extui %31 : i1 to i32
    %c0_i32_11 = arith.constant 0 : i32
    %33 = arith.cmpi ne, %32, %c0_i32_11 : i32
    scf.if %33 {
      %c0_21 = arith.constant 0 : index
      %c0_22 = arith.constant 0 : index
      %49 = vector.load %arg8[%c0_21, %c0_22] : memref<8x1xf32, #tpu.memory_space<vmem>>, vector<8x1xf32>
      tpu.vector_store %arg8[%c0_21, %c0_22], %21 {strides = array<i32>} : memref<8x1xf32, #tpu.memory_space<vmem>>, vector<8x1xf32>,
    } else {
    }
    %c0_i32_12 = arith.constant 0 : i32
    %34 = arith.cmpi sgt, %arg2, %c0_i32_12 : i32
    %35 = arith.extui %34 : i1 to i32
    %c0_i32_13 = arith.constant 0 : i32
    %36 = arith.cmpi ne, %35, %c0_i32_13 : i32
    scf.if %36 {
      %c0_21 = arith.constant 0 : index
      %c0_22 = arith.constant 0 : index
      %49 = vector.load %arg8[%c0_21, %c0_22] : memref<8x1xf32, #tpu.memory_space<vmem>>, vector<8x1xf32>
      %50 = arith.maximumf %49, %21 : vector<8x1xf32>
      %51 = arith.subf %49, %50 : vector<8x1xf32>
      %52 = math.exp %51 : vector<8x1xf32>
      %53 = arith.subf %21, %50 : vector<8x1xf32>
      %54 = math.exp %53 : vector<8x1xf32>
      %55 = arith.addf %52, %54 : vector<8x1xf32>
      %56 = math.log %55 : vector<8x1xf32>
      %57 = arith.addf %50, %56 : vector<8x1xf32>
      %c0_23 = arith.constant 0 : index
      %c0_24 = arith.constant 0 : index
      %58 = vector.load %arg8[%c0_23, %c0_24] : memref<8x1xf32, #tpu.memory_space<vmem>>, vector<8x1xf32>
      tpu.vector_store %arg8[%c0_23, %c0_24], %57 {strides = array<i32>} : memref<8x1xf32, #tpu.memory_space<vmem>>, vector<8x1xf32>,
    } else {
    }
    %c0_i32_14 = arith.constant 0 : i32
    %37 = arith.cmpi eq, %arg1, %c0_i32_14 : i32
    %38 = arith.extui %37 : i1 to i32
    %c0_i32_15 = arith.constant 0 : i32
    %39 = arith.cmpi ne, %38, %c0_i32_15 : i32
    scf.if %39 {
      %c0_21 = arith.constant 0 : index
      %49 = arith.index_cast %arg2 : i32 to index
      %c0_22 = arith.constant 0 : index
      %c0_23 = arith.constant 0 : index
      %50 = vector.load %arg7[%c0_21, %49, %c0_22, %c0_23] : memref<1x1x1x8xf32, #tpu.memory_space<vmem>>, vector<1x1x1x8xf32>
      %51 = vector.shape_cast %50 : vector<1x1x1x8xf32> to vector<1x8xf32>
      %52 = vector.shape_cast %30 : vector<1x8xf32> to vector<1x1x1x8xf32>
      tpu.vector_store %arg7[%c0_21, %49, %c0_22, %c0_23], %52 {strides = array<i32>} : memref<1x1x1x8xf32, #tpu.memory_space<vmem>>, vector<1x1x1x8xf32>,
    } else {
    }
    %c0_i32_16 = arith.constant 0 : i32
    %40 = arith.cmpi sgt, %arg1, %c0_i32_16 : i32
    %41 = arith.extui %40 : i1 to i32
    %c0_i32_17 = arith.constant 0 : i32
    %42 = arith.cmpi ne, %41, %c0_i32_17 : i32
    scf.if %42 {
      %c0_21 = arith.constant 0 : index
      %49 = arith.index_cast %arg2 : i32 to index
      %c0_22 = arith.constant 0 : index
      %c0_23 = arith.constant 0 : index
      %50 = vector.load %arg7[%c0_21, %49, %c0_22, %c0_23] : memref<1x1x1x8xf32, #tpu.memory_space<vmem>>, vector<1x1x1x8xf32>
      %51 = vector.shape_cast %50 : vector<1x1x1x8xf32> to vector<1x8xf32>
      %52 = arith.maximumf %51, %30 : vector<1x8xf32>
      %53 = arith.subf %51, %52 : vector<1x8xf32>
      %54 = math.exp %53 : vector<1x8xf32>
      %55 = arith.subf %30, %52 : vector<1x8xf32>
      %56 = math.exp %55 : vector<1x8xf32>
      %57 = arith.addf %54, %56 : vector<1x8xf32>
      %58 = math.log %57 : vector<1x8xf32>
      %59 = arith.addf %52, %58 : vector<1x8xf32>
      %c0_24 = arith.constant 0 : index
      %60 = arith.index_cast %arg2 : i32 to index
      %c0_25 = arith.constant 0 : index
      %c0_26 = arith.constant 0 : index
      %61 = vector.load %arg7[%c0_24, %60, %c0_25, %c0_26] : memref<1x1x1x8xf32, #tpu.memory_space<vmem>>, vector<1x1x1x8xf32>
      %62 = vector.shape_cast %61 : vector<1x1x1x8xf32> to vector<1x8xf32>
      %63 = vector.shape_cast %59 : vector<1x8xf32> to vector<1x1x1x8xf32>
      tpu.vector_store %arg7[%c0_24, %60, %c0_25, %c0_26], %63 {strides = array<i32>} : memref<1x1x1x8xf32, #tpu.memory_space<vmem>>, vector<1x1x1x8xf32>,
    } else {
    }
    %43 = arith.cmpi eq, %1, %arg2 : i32
    %44 = arith.extui %43 : i1 to i32
    %c0_i32_18 = arith.constant 0 : i32
    %45 = arith.cmpi ne, %44, %c0_i32_18 : i32
    scf.if %45 {
      %49 = tpu.iota {dimensions = array<i32: 0>} : vector<8x1xi32>
      %50 = tpu.iota {dimensions = array<i32: 1>} : vector<1x8xi32>
      %51 = vector.broadcast %49 : vector<8x1xi32> to vector<8x8xi32>
      %52 = vector.broadcast %50 : vector<1x8xi32> to vector<8x8xi32>
      %53 = arith.cmpi eq, %51, %52 : vector<8x8xi32>
      %cst_21 = arith.constant 0.000000e+00 : f32
      %54 = vector.broadcast %cst_21 : f32 to vector<8x8xf32>
      %55 = arith.select %53, %12, %54 : vector<8x8xi1>, vector<8x8xf32>
      %56 = vector.shape_cast %55 : vector<8x8xf32> to vector<1x8x8xf32>
      %cst_22 = arith.constant dense<0.000000e+00> : vector<1xf32>
      %57 = vector.multi_reduction <add>, %56, %cst_22 [1, 2] : vector<1x8x8xf32> to vector<1xf32>
      %58 = vector.shape_cast %57 : vector<1xf32> to vector<1x1x1xf32>
      %59 = vector.extract %58[0, 0, 0] : f32 from vector<1x1x1xf32>
      %60 = vector.broadcast %59 : f32 to vector<1x1xf32>
      %c0_23 = arith.constant 0 : index
      %c0_24 = arith.constant 0 : index
      %c0_25 = arith.constant 0 : index
      %61 = vector.load %arg6[%c0_23, %c0_24, %c0_25] : memref<1x1x1xf32, #tpu.memory_space<vmem>>, vector<1x1x1xf32>
      %62 = vector.shape_cast %61 : vector<1x1x1xf32> to vector<1x1xf32>
      %cst_26 = arith.constant -2.000000e+00 : f32
      %63 = vector.broadcast %cst_26 : f32 to vector<1x1xf32>
      %64 = arith.mulf %63, %60 : vector<1x1xf32>
      %65 = arith.addf %62, %64 : vector<1x1xf32>
      %c0_27 = arith.constant 0 : index
      %c0_28 = arith.constant 0 : index
      %c0_29 = arith.constant 0 : index
      %66 = vector.load %arg6[%c0_27, %c0_28, %c0_29] : memref<1x1x1xf32, #tpu.memory_space<vmem>>, vector<1x1x1xf32>
      %67 = vector.shape_cast %66 : vector<1x1x1xf32> to vector<1x1xf32>
      %68 = vector.shape_cast %65 : vector<1x1xf32> to vector<1x1x1xf32>
      tpu.vector_store %arg6[%c0_27, %c0_28, %c0_29], %68 {strides = array<i32>} : memref<1x1x1xf32, #tpu.memory_space<vmem>>, vector<1x1x1xf32>,
    } else {
    }
    %c0_i32_19 = arith.constant 0 : i32
    %46 = arith.cmpi eq, %arg2, %c0_i32_19 : i32
    %47 = arith.extui %46 : i1 to i32
    %c0_i32_20 = arith.constant 0 : i32
    %48 = arith.cmpi ne, %47, %c0_i32_20 : i32
    scf.if %48 {
      %c0_21 = arith.constant 0 : index
      %c0_22 = arith.constant 0 : index
      %49 = vector.load %arg8[%c0_21, %c0_22] : memref<8x1xf32, #tpu.memory_space<vmem>>, vector<8x1xf32>
      %c0_23 = arith.constant 0 : index
      %c0_24 = arith.constant 0 : index
      %c0_25 = arith.constant 0 : index
      %50 = vector.load %arg6[%c0_23, %c0_24, %c0_25] : memref<1x1x1xf32, #tpu.memory_space<vmem>>, vector<1x1x1xf32>
      %51 = vector.shape_cast %50 : vector<1x1x1xf32> to vector<1x1xf32>
      %52 = vector.shape_cast %49 : vector<8x1xf32> to vector<1x8x1xf32>
      %cst_26 = arith.constant dense<0.000000e+00> : vector<1xf32>
      %53 = vector.multi_reduction <add>, %52, %cst_26 [1, 2] : vector<1x8x1xf32> to vector<1xf32>
      %54 = vector.shape_cast %53 : vector<1xf32> to vector<1x1x1xf32>
      %55 = vector.extract %54[0, 0, 0] : f32 from vector<1x1x1xf32>
      %56 = vector.broadcast %55 : f32 to vector<1x1xf32>
      %57 = arith.addf %51, %56 : vector<1x1xf32>
      %c0_27 = arith.constant 0 : index
      %c0_28 = arith.constant 0 : index
      %c0_29 = arith.constant 0 : index
      %58 = vector.load %arg6[%c0_27, %c0_28, %c0_29] : memref<1x1x1xf32, #tpu.memory_space<vmem>>, vector<1x1x1xf32>
      %59 = vector.shape_cast %58 : vector<1x1x1xf32> to vector<1x1xf32>
      %60 = vector.shape_cast %57 : vector<1x1xf32> to vector<1x1x1xf32>
      tpu.vector_store %arg6[%c0_27, %c0_28, %c0_29], %60 {strides = array<i32>} : memref<1x1x1xf32, #tpu.memory_space<vmem>>, vector<1x1x1xf32>,
    } else {
    }
    return
  }
  func.func @transform_0(%arg0: i32, %arg1: i32, %arg2: i32) -> i32 {
    %c0_i32 = arith.constant 0 : i32
    %c0_i32_0 = arith.constant 0 : i32
    return %c0_i32 : i32
  }
  func.func @transform_1(%arg0: i32, %arg1: i32, %arg2: i32) -> (i32, i32) {
    %c1_i32 = arith.constant 1 : i32
    %0 = arith.muli %arg0, %c1_i32 : i32
    %1 = arith.addi %0, %arg1 : i32
    %c0_i32 = arith.constant 0 : i32
    %c0_i32_0 = arith.constant 0 : i32
    return %1, %c0_i32 : i32, i32
  }
  func.func @transform_2(%arg0: i32, %arg1: i32, %arg2: i32) -> (i32, i32) {
    %c0_i32 = arith.constant 0 : i32
    %c0_i32_0 = arith.constant 0 : i32
    return %arg2, %c0_i32 : i32, i32
  }
  func.func @transform_3(%arg0: i32, %arg1: i32, %arg2: i32) -> (i32, i32, i32) {
    %c0_i32 = arith.constant 0 : i32
    %c0_i32_0 = arith.constant 0 : i32
    %c0_i32_1 = arith.constant 0 : i32
    return %arg0, %c0_i32, %c0_i32_0 : i32, i32, i32
  }
  func.func @transform_4(%arg0: i32, %arg1: i32, %arg2: i32) -> (i32, i32, i32, i32) {
    %c0_i32 = arith.constant 0 : i32
    %c0_i32_0 = arith.constant 0 : i32
    %c0_i32_1 = arith.constant 0 : i32
    %c0_i32_2 = arith.constant 0 : i32
    return %arg0, %c0_i32, %c0_i32_0, %c0_i32_1 : i32, i32, i32, i32
  }
}

</mosaic_0001>

<llo_original>
// kernel: tpu_custom_call.1
$region0: #{tpu_custom_call.1}
  #allocation0 [shape = 'u32[]', space=smem, size = 0x4, offset = 0x4, fixed_abs, tag = 'smem constant byte address 0x4 - core index']
  #allocation1 [shape = 'u32[144,128]{1,0:T(1,128)}', space=vmem, size = 0x12000, scoped, tag = 'internal scratch']
  #allocation2 [shape = 'f32[8,1]{1,0:T(8,128)}', space=vmem, size = 0x1000, scoped, tag = 'scratch operand']
  #allocation3 [shape = 'f32[1]{0:T(128)S(6)}', space=smem, size = 0x200, scoped, tag = 'scoped memory for tpu_custom_call.1']
  %s0 = inlined_call_operand.<no memory space> [shape: f32[1], index: 0, kind: input, shape index: {}]
  %s1 = inlined_call_operand.hbm [shape: f32[8,128], index: 1, kind: input, shape index: {}]
  %s2 = inlined_call_operand.hbm [shape: f32[8,128], index: 2, kind: input, shape index: {}]
  %s3 = inlined_call_operand.hbm [shape: f32[1,1,1], index: 3, kind: output, shape index: {0}]
  %s4 = inlined_call_operand.hbm [shape: f32[1,1,1,8], index: 4, kind: output, shape index: {1}]
  %5 = xla_tuple %s3, %s4
  %s6 = sld [smem:[#allocation0]]
  $region66: #{tpu_custom_call.1} parent=0
    _
  %s8 = ssub.s32 1, %s6
  %s9 = scalar_select 0, %s8, %s6
  %10 = sst [smem:[#allocation3]] %s0
  $region1: #{tpu_custom_call.1} parent=0
    #allocation4 [shape = 'u8[4096]{0}', space=vmem, size = 0x1000, scoped, tag = 'input window, operand 1, single buffered']
    #allocation5 [shape = 's32[1]{0}', space=sflag, size = 0x4, scoped, tag = 'scoped memory for tpu_custom_call.1']
    #allocation6 [shape = 's32[1]{0}', space=sflag, size = 0x4, scoped, tag = 'scoped memory for tpu_custom_call.1']
    #allocation7 [shape = 'u8[4096]{0}', space=vmem, size = 0x1000, scoped, tag = 'input window, operand 2, single buffered']
    #allocation8 [shape = 's32[1]{0}', space=sflag, size = 0x4, scoped, tag = 'scoped memory for tpu_custom_call.1']
    #allocation9 [shape = 'u8[512]{0}', space=vmem, size = 0x400, scoped, tag = 'output window, operand 0, single buffered']
    #allocation10 [shape = 'u8[512]{0}', space=vmem, size = 0x400, scoped, tag = 'output window, operand 1, single buffered']
    #allocation11 [shape = 's32[1]{0}', space=sflag, size = 0x4, scoped, tag = 'scoped memory for tpu_custom_call.1']
    %11 = vsyncpa [#allocation5], 0
    %12 = vsyncpa [#allocation8], 0
    %13 = vsyncpa [#allocation6], 0
    %14 = vsyncpa [#allocation11], 0
    // Predicated region
    $region2: #{tpu_custom_call.1} parent=1 // pred_check
      _
    $region3: #{tpu_custom_call.1} parent=1 // pred_check_branch
      %16 = sbr.rel (0) target = $region5
    $region4: #{tpu_custom_call.1} parent=1 // pred_region
      _
    $region5: #{tpu_custom_call.1} parent=1 // pred_fallthru
      _
    // Predicated region
    $region6: #{tpu_custom_call.1} parent=1 // pred_check
      _
    $region7: #{tpu_custom_call.1} parent=1 // pred_check_branch
      %18 = sbr.rel (0) target = $region9
    $region8: #{tpu_custom_call.1} parent=1 // pred_region
      %s19 = sadd.s32 0, 0
      %s21 = ssub.s32 128, 128
      %22 = vsyncadd [#allocation5], %s21
      %s23 = smul.addr %s19, 128
      %s24 = scalar_lea.hbm %s1, %s23
      %s26 = sshll.u32 [#allocation4], 4
      %s27 = int_to_ptr.vmem [resolvable:$true] %s26
      %29 = dma.hbm_to_vmem [thread:$0]  %s24, 128, %s27, [#allocation5]
    $region9: #{tpu_custom_call.1} parent=1 // pred_fallthru
      _
    // Predicated region
    $region10: #{tpu_custom_call.1} parent=1 // pred_check
      _
    $region11: #{tpu_custom_call.1} parent=1 // pred_check_branch
      %31 = sbr.rel (0) target = $region13
    $region12: #{tpu_custom_call.1} parent=1 // pred_region
      %s33 = ssub.s32 128, 128
      %34 = vsyncadd [#allocation8], %s33
      %s36 = sshll.u32 [#allocation7], 4
      %s37 = int_to_ptr.vmem [resolvable:$true] %s36
      %39 = dma.hbm_to_vmem [thread:$0]  %s2, 128, %s37, [#allocation8]
    $region13: #{tpu_custom_call.1} parent=1 // pred_fallthru
      _
    // Predicated region
    $region14: #{tpu_custom_call.1} parent=1 // pred_check
      _
    $region15: #{tpu_custom_call.1} parent=1 // pred_check_branch
      %41 = sbr.rel (0) target = $region17
    $region16: #{tpu_custom_call.1} parent=1 // pred_region
      %42 = dma.done [#allocation5], 128
    $region17: #{tpu_custom_call.1} parent=1 // pred_fallthru
      _
    // Predicated region
    $region18: #{tpu_custom_call.1} parent=1 // pred_check
      _
    $region19: #{tpu_custom_call.1} parent=1 // pred_check_branch
      %44 = sbr.rel (0) target = $region21
    $region20: #{tpu_custom_call.1} parent=1 // pred_region
      %45 = dma.done [#allocation8], 128
    $region21: #{tpu_custom_call.1} parent=1 // pred_fallthru
      _
    %s46 = sadd.s32 0, 0
    %s47 = sadd.s32 0, 0
    %p48 = scmp.eq.s32.totalorder 0, 0
    %p49 = scmp.eq.s32.totalorder 0, 0
    %p50 = pnand %p48, %p49
    %p51 = pneg %p50
    // Predicated region
    $region22: #{tpu_custom_call.1} parent=1 // pred_check
      _
    $region23: #{tpu_custom_call.1} parent=1 // pred_check_branch
      %53 = sbr.rel (%p50) target = $region25
    $region24: #{tpu_custom_call.1} parent=1 // pred_region
      %vm54 = vcmask 0
      %55 = vst.msk [vmem:[#allocation9] sm:$0x1] %vm54, 0.0
    $region25: #{tpu_custom_call.1} parent=1 // pred_fallthru
      _
    %v56 = vld [vmem:[#allocation4] sm:$0xff]
    %v57 = vld [vmem:[#allocation7] sm:$0xff]
    %58 = vmatprep.subr.mxu0 0.0
    %59 = vmatpush1.xpose.msra.mxu0 0.0
    %60 = vmatprep.subr.mxu0 0.0
    %61 = vmatpush1.xpose.msra.mxu0 0.0
    %62 = vmatprep.subr.mxu0 0.0
    %63 = vmatpush1.xpose.msra.mxu0 0.0
    %64 = vmatprep.subr.mxu0 0.0
    %65 = vmatpush1.xpose.msra.mxu0 0.0
    %66 = vmatprep.subr.mxu0 0.0
    %67 = vmatpush1.xpose.msra.mxu0 0.0
    %68 = vmatprep.subr.mxu0 0.0
    %69 = vmatpush1.xpose.msra.mxu0 0.0
    %70 = vmatprep.subr.mxu0 0.0
    %71 = vmatpush1.xpose.msra.mxu0 0.0
    %72 = vmatprep.subr.mxu0 0.0
    %73 = vmatpush1.xpose.msra.mxu0 0.0
    %74 = vmatprep.subr.mxu0 0.0
    %75 = vmatpush1.xpose.msra.mxu0 0.0
    %76 = vmatprep.subr.mxu0 0.0
    %77 = vmatpush1.xpose.msra.mxu0 0.0
    %78 = vmatprep.subr.mxu0 0.0
    %79 = vmatpush1.xpose.msra.mxu0 0.0
    %80 = vmatprep.subr.mxu0 0.0
    %81 = vmatpush1.xpose.msra.mxu0 0.0
    %82 = vmatprep.subr.mxu0 0.0
    %83 = vmatpush1.xpose.msra.mxu0 0.0
    %84 = vmatprep.subr.mxu0 0.0
    %85 = vmatpush1.xpose.msra.mxu0 0.0
    %86 = vmatprep.subr.mxu0 0.0
    %87 = vmatpush1.xpose.msra.mxu0 0.0
    %88 = vmatprep.subr.mxu0 0.0
    %89 = vmatpush1.xpose.msra.mxu0 %v57
    %90 = vmatprep.subr.mxu0 0.0
    %91 = vmatpush2.xpose.msra.mxu0 0.0
    %92 = vmatprep.subr.mxu0 0.0
    %93 = vmatpush2.xpose.msra.mxu0 0.0
    %94 = vmatprep.subr.mxu0 0.0
    %95 = vmatpush2.xpose.msra.mxu0 0.0
    %96 = vmatprep.subr.mxu0 0.0
    %97 = vmatpush2.xpose.msra.mxu0 0.0
    %98 = vmatprep.subr.mxu0 0.0
    %99 = vmatpush2.xpose.msra.mxu0 0.0
    %100 = vmatprep.subr.mxu0 0.0
    %101 = vmatpush2.xpose.msra.mxu0 0.0
    %102 = vmatprep.subr.mxu0 0.0
    %103 = vmatpush2.xpose.msra.mxu0 0.0
    %104 = vmatprep.subr.mxu0 0.0
    %105 = vmatpush2.xpose.msra.mxu0 0.0
    %106 = vmatprep.subr.mxu0 0.0
    %107 = vmatpush2.xpose.msra.mxu0 0.0
    %108 = vmatprep.subr.mxu0 0.0
    %109 = vmatpush2.xpose.msra.mxu0 0.0
    %110 = vmatprep.subr.mxu0 0.0
    %111 = vmatpush2.xpose.msra.mxu0 0.0
    %112 = vmatprep.subr.mxu0 0.0
    %113 = vmatpush2.xpose.msra.mxu0 0.0
    %114 = vmatprep.subr.mxu0 0.0
    %115 = vmatpush2.xpose.msra.mxu0 0.0
    %116 = vmatprep.subr.mxu0 0.0
    %117 = vmatpush2.xpose.msra.mxu0 0.0
    %118 = vmatprep.subr.mxu0 0.0
    %119 = vmatpush2.xpose.msra.mxu0 0.0
    %120 = vmatprep.subr.mxu0 0.0
    %121 = vmatpush2.xpose.msra.mxu0 0.0
    %122 = vmatprep.mubr.f32.mxu0 0.0
    %123 = vmatmul.mubr.f32.gmra.mxu0 %v56
    %v124 = vpop.f32.mrf.mxu0
    %v125 = vadd.f32 0.0, %v124
    %v126 = vpop.f32.mrf.mxu0
    %127 = vdwg.mxu0
    %s128 = sld [smem:[#allocation3]]
    %v129 = vstv %s128
    %v130 = vmul.f32 %v125, %v129
    %vm131 = vcmask 64512
    %v132 = vsel %vm131, %v130, -inf
    %133 = vmax.xlane.f32.xlu0 %v132
    %v134 = vpop.xlane.xlu0 %133
    %v135 = vsub.f32 %v130, %v134
    %v136 = vmul.f32 %v135, 1.442695
    %v137 = vpow.pop %v136
    %v138 = vsel %vm131, %v137, 0.0
    %139 = vadd.xlane.f32.xlu0 %v138
    %v140 = vpop.xlane.xlu0 %139
    %v141 = vlog2.pop %v140
    %v142 = vmul.f32 %v141, 0.6931472
    %v143 = vadd.f32 %v134, %v142
    %v144 = vrot.slane %v132, 4
    %v145 = vmax.f32 %v132, %v144
    %v146 = vrot.slane %v145, 2
    %v147 = vmax.f32 %v145, %v146
    %v148 = vrot.slane %v147, 1
    %v149 = vmax.f32 %v147, %v148
    %v150 = vsub.f32 %v130, %v149
    %v151 = vmul.f32 %v150, 1.442695
    %v152 = vpow.pop %v151
    %v153 = vsel %vm131, %v152, 0.0
    %v154 = vrot.slane %v153, 4
    %v155 = vadd.f32 %v153, %v154
    %v156 = vrot.slane %v155, 2
    %v157 = vadd.f32 %v155, %v156
    %v158 = vrot.slane %v157, 1
    %v159 = vadd.f32 %v157, %v158
    %v160 = vlog2.pop %v159
    %v161 = vmul.f32 %v160, 0.6931472
    %v162 = vadd.f32 %v149, %v161
    // Predicated region
    $region26: #{tpu_custom_call.1} parent=1 // pred_check
      %p163 = pneg %p49
    $region27: #{tpu_custom_call.1} parent=1 // pred_check_branch
      %165 = sbr.rel (%p163) target = $region29
    $region28: #{tpu_custom_call.1} parent=1 // pred_region
      %vm166 = vcmask 7168
      %167 = vst.msk [vmem:[#allocation2] sm:$0xff] %vm166, %v143
    $region29: #{tpu_custom_call.1} parent=1 // pred_fallthru
      _
    %p168 = scmp.gt.s32.totalorder 0, 0
    // Predicated region
    $region30: #{tpu_custom_call.1} parent=1 // pred_check
      %p169 = pneg %p168
    $region31: #{tpu_custom_call.1} parent=1 // pred_check_branch
      %171 = sbr.rel (%p169) target = $region33
    $region32: #{tpu_custom_call.1} parent=1 // pred_region
      %v172 = vld [vmem:[#allocation2] sm:$0xff]
      %v173 = vmax.f32 %v172, %v143
      %v174 = vsub.f32 %v172, %v173
      %v175 = vmul.f32 %v174, 1.442695
      %v176 = vpow.pop %v175
      %v177 = vsub.f32 %v143, %v173
      %v178 = vmul.f32 %v177, 1.442695
      %v179 = vpow.pop %v178
      %v180 = vadd.f32 %v176, %v179
      %v181 = vlog2.pop %v180
      %v182 = vmul.f32 %v181, 0.6931472
      %v183 = vadd.f32 %v173, %v182
      %vm184 = vcmask 7168
      %185 = vst.msk [vmem:[#allocation2] sm:$0xff] %vm184, %v183
    $region33: #{tpu_custom_call.1} parent=1 // pred_fallthru
      _
    // Predicated region
    $region34: #{tpu_custom_call.1} parent=1 // pred_check
      %p186 = pneg %p48
    $region35: #{tpu_custom_call.1} parent=1 // pred_check_branch
      %188 = sbr.rel (%p186) target = $region37
    $region36: #{tpu_custom_call.1} parent=1 // pred_region
      %vm189 = vcmask 57344
      %190 = vst.msk [vmem:[#allocation10] sm:$0x1] %vm189, %v162
    $region37: #{tpu_custom_call.1} parent=1 // pred_fallthru
      _
    %p191 = scmp.gt.s32.totalorder 0, 0
    // Predicated region
    $region38: #{tpu_custom_call.1} parent=1 // pred_check
      %p192 = pneg %p191
    $region39: #{tpu_custom_call.1} parent=1 // pred_check_branch
      %194 = sbr.rel (%p192) target = $region41
    $region40: #{tpu_custom_call.1} parent=1 // pred_region
      %v195 = vld [vmem:[#allocation10] sm:$0x1]
      %v196 = vmax.f32 %v195, %v162
      %v197 = vsub.f32 %v195, %v196
      %v198 = vmul.f32 %v197, 1.442695
      %v199 = vpow.pop %v198
      %v200 = vsub.f32 %v162, %v196
      %v201 = vmul.f32 %v200, 1.442695
      %v202 = vpow.pop %v201
      %v203 = vadd.f32 %v199, %v202
      %v204 = vlog2.pop %v203
      %v205 = vmul.f32 %v204, 0.6931472
      %v206 = vadd.f32 %v196, %v205
      %vm207 = vcmask 57344
      %208 = vst.msk [vmem:[#allocation10] sm:$0x1] %vm207, %v206
    $region41: #{tpu_custom_call.1} parent=1 // pred_fallthru
      _
    %p209 = scmp.eq.s32.totalorder %s47, 0
    // Predicated region
    $region42: #{tpu_custom_call.1} parent=1 // pred_check
      %p210 = pneg %p209
    $region43: #{tpu_custom_call.1} parent=1 // pred_check_branch
      %212 = sbr.rel (%p210) target = $region45
    $region44: #{tpu_custom_call.1} parent=1 // pred_region
      %v213 = vlaneseq
      %v214 = vshrl.u32 %v213, 7
      %v215 = vlaneseq
      %v216 = vand.u32 %v215, 127
      %vm217 = vcmp.eq.s32.totalorder %v214, %v216
      %v218 = vsel %vm217, %v130, 0.0
      %v219 = vsel %vm131, %v218, 0.0
      %220 = vadd.xlane.f32.xlu0 %v219
      %v221 = vpop.xlane.xlu0 %220
      %v222 = vrot.slane %v221, 4
      %v223 = vadd.f32 %v221, %v222
      %v224 = vrot.slane %v223, 2
      %v225 = vadd.f32 %v223, %v224
      %v226 = vrot.slane %v225, 1
      %v227 = vadd.f32 %v225, %v226
      %s228 = vtos %v227
      %v229 = vstv %s228
      %v230 = vld [vmem:[#allocation9] sm:$0x1]
      %v231 = vmul.f32 %v229, -2.0
      %v232 = vadd.f32 %v230, %v231
      %vm233 = vcmask 0
      %234 = vst.msk [vmem:[#allocation9] sm:$0x1] %vm233, %v232
    $region45: #{tpu_custom_call.1} parent=1 // pred_fallthru
      _
    // Predicated region
    $region46: #{tpu_custom_call.1} parent=1 // pred_check
      %p235 = pneg %p49
    $region47: #{tpu_custom_call.1} parent=1 // pred_check_branch
      %237 = sbr.rel (%p235) target = $region49
    $region48: #{tpu_custom_call.1} parent=1 // pred_region
      %v238 = vld [vmem:[#allocation2] sm:$0xff]
      %v239 = vld [vmem:[#allocation9] sm:$0x1]
      %vm240 = vcmask 7168
      %v241 = vsel %vm240, %v238, 0.0
      %242 = vadd.xlane.f32.xlu0 %v241
      %v243 = vpop.xlane.xlu0 %242
      %v244 = vrot.slane %v243, 4
      %v245 = vadd.f32 %v243, %v244
      %v246 = vrot.slane %v245, 2
      %v247 = vadd.f32 %v245, %v246
      %v248 = vrot.slane %v247, 1
      %v249 = vadd.f32 %v247, %v248
      %s250 = vtos %v249
      %v251 = vstv %s250
      %v252 = vadd.f32 %v239, %v251
      %vm253 = vcmask 0
      %254 = vst.msk [vmem:[#allocation9] sm:$0x1] %vm253, %v252
    $region49: #{tpu_custom_call.1} parent=1 // pred_fallthru
      _
    // Predicated region
    $region50: #{tpu_custom_call.1} parent=1 // pred_check
      _
    $region51: #{tpu_custom_call.1} parent=1 // pred_check_branch
      %256 = sbr.rel (0) target = $region53
    $region52: #{tpu_custom_call.1} parent=1 // pred_region
      %s258 = ssub.s32 16, 16
      %259 = vsyncadd [#allocation6], %s258
      %s261 = sshll.u32 [#allocation9], 4
      %s262 = int_to_ptr.vmem [resolvable:$true] %s261
      %264 = dma.vmem_to_hbm [thread:$0]  %s262, 16, %s3, [#allocation6]
    $region53: #{tpu_custom_call.1} parent=1 // pred_fallthru
      _
    // Predicated region
    $region54: #{tpu_custom_call.1} parent=1 // pred_check
      _
    $region55: #{tpu_custom_call.1} parent=1 // pred_check_branch
      %266 = sbr.rel (0) target = $region57
    $region56: #{tpu_custom_call.1} parent=1 // pred_region
      %s268 = ssub.s32 16, 16
      %269 = vsyncadd [#allocation11], %s268
      %s271 = sshll.u32 [#allocation10], 4
      %s272 = int_to_ptr.vmem [resolvable:$true] %s271
      %274 = dma.vmem_to_hbm [thread:$0]  %s272, 16, %s4, [#allocation11]
    $region57: #{tpu_custom_call.1} parent=1 // pred_fallthru
      _
    // Predicated region
    $region58: #{tpu_custom_call.1} parent=1 // pred_check
      _
    $region59: #{tpu_custom_call.1} parent=1 // pred_check_branch
      %276 = sbr.rel (0) target = $region61
    $region60: #{tpu_custom_call.1} parent=1 // pred_region
      %277 = dma.done [#allocation6], 16
    $region61: #{tpu_custom_call.1} parent=1 // pred_fallthru
      _
    // Predicated region
    $region62: #{tpu_custom_call.1} parent=1 // pred_check
      _
    $region63: #{tpu_custom_call.1} parent=1 // pred_check_branch
      %279 = sbr.rel (0) target = $region65
    $region64: #{tpu_custom_call.1} parent=1 // pred_region
      %280 = dma.done [#allocation11], 16
    $region65: #{tpu_custom_call.1} parent=1 // pred_fallthru
      _
    %281 = vsyncpa [#allocation5], 1
    %282 = vsyncpa [#allocation8], 1
    %283 = vsyncpa [#allocation6], 1
    %284 = vsyncpa [#allocation11], 1

</llo_original>
